<compile_context>
chip_gen: v5e
topology: v5e:2x2
jax: 0.10.0
libtpu: 0.0.40
codegen_flags: <defaults>
</compile_context>

<pallas_src>
import functools

import jax
import jax.numpy as jnp
from jax import lax
from jax.experimental import pallas as pl
from jax.experimental.pallas import tpu as pltpu

_SUBLANE = 8
_LANE = 128
_MAX_TILE_C = 2048                       # class-tile width when C is tiled (multiple of 128)
_BLOCK_BYTE_BUDGET = 8 * 1024 * 1024     # per logits block (Pallas double-buffers it)


def _ce_kernel(x_ref, wi_ref, out_ref, m_acc, s_acc,
               *, n_rows, n_cols, tile_n, tile_c):
    """One (batch-tile, class-tile) grid step of weighted logsumexp accumulation.

    x_ref  : (tile_n, tile_c) logits block (native dtype)
    wi_ref : (tile_n, 1)      f32 per-sample weight  w[y_i]  (pre-gathered in XLA)
    out_ref: (1, 1, 128)      f32 per-batch-tile partial  sum_i w_i * lse_i
    m_acc / s_acc : (tile_n, 1) f32 VMEM scratch (online logsumexp running
                    max and running sum-of-exp)

    NOTE: the class axis (grid axis 1) must stay the innermost grid dimension
    and the output block index must be invariant in it; out_ref is only
    written under pl.when(c == n_ct - 1).
    """
    i = pl.program_id(0)                 # batch-tile index   ("parallel")
    c = pl.program_id(1)                 # class-tile index   ("arbitrary", innermost)
    n_ct = pl.num_programs(1)

    @pl.when(c == 0)
    def _():
        m_acc[...] = jnp.full_like(m_acc, -jnp.inf)
        s_acc[...] = jnp.zeros_like(s_acc)

    def update(x):
        # Online logsumexp update: exp/max in native dtype, f32 accumulators.
        m_blk = jnp.max(x, axis=-1, keepdims=True).astype(jnp.float32)   # (tile_n, 1)
        m_new = jnp.maximum(m_acc[...], m_blk)
        alpha = jnp.exp(m_acc[...] - m_new)                              # rescale old sum
        p = jnp.exp(x - m_new.astype(x.dtype))                           # (tile_n, tile_c)
        s_blk = jnp.sum(p, axis=-1, keepdims=True, dtype=jnp.float32)
        s_acc[...] = s_acc[...] * alpha + s_blk
        m_acc[...] = m_new

    if n_cols % tile_c != 0:
        # Only the last class tile carries padded columns: keep the hot loop
        # mask-free and neutralize padding on the last step only.
        @pl.when(c < n_ct - 1)
        def _():
            update(x_ref[...])

        @pl.when(c == n_ct - 1)
        def _():
            x = x_ref[...]
            col_ids = c * tile_c + lax.broadcasted_iota(
                jnp.int32, (tile_n, tile_c), 1)
            update(jnp.where(col_ids < n_cols, x,
                             jnp.asarray(-jnp.inf, x.dtype)))
    else:
        update(x_ref[...])

    @pl.when(c == n_ct - 1)
    def _():
        lse = m_acc[...] + jnp.log(s_acc[...])                           # (tile_n, 1)
        wlse = wi_ref[...] * lse
        if n_rows % tile_n != 0:
            # Last batch tile is padded: zero out padded rows.
            row_ids = i * tile_n + lax.broadcasted_iota(jnp.int32, (tile_n, 1), 0)
            wlse = jnp.where(row_ids < n_rows, wlse, 0.0)
        total = jnp.sum(wlse, axis=0, keepdims=True)                     # (1, 1)
        out_ref[...] = jnp.broadcast_to(total.reshape(1, 1, 1), (1, 1, _LANE))


def _choose_tiles(n_rows, n_cols, itemsize):
    """Pick (tile_n, tile_c) against the 8 MiB block budget (v7x-safe)."""
    tile_c = n_cols if n_cols <= _MAX_TILE_C else _MAX_TILE_C   # multiple of 128 when tiled
    max_rows = _BLOCK_BYTE_BUDGET // max(1, tile_c * itemsize)
    max_rows = max(_SUBLANE, (max_rows // _SUBLANE) * _SUBLANE)  # no artificial 1024 cap
    if n_rows <= max_rows:
        if n_rows >= 2 * _SUBLANE:
            # Split the batch axis into >= 2 tiles so both v7x TensorCores get
            # work (the "parallel" batch axis shards across cores).
            half = -(-n_rows // 2)
            tile_n = ((half + _SUBLANE - 1) // _SUBLANE) * _SUBLANE
            tile_n = min(tile_n, max_rows)
        else:
            tile_n = n_rows          # single block; "full dim" satisfies layout rule
    else:
        tile_n = max_rows            # multiple of 8; last block masked if partial
    return tile_n, tile_c


def cross_entropy_loss(inputs, targets, weights=None):
    """F.cross_entropy(inputs, targets, weight=weights) via a Pallas TPU kernel."""
    N, C = inputs.shape
    tile_n, tile_c = _choose_tiles(N, C, jnp.dtype(inputs.dtype).itemsize)
    num_n = pl.cdiv(N, tile_n)
    num_c = pl.cdiv(C, tile_c)

    t = targets.astype(jnp.int32)
    in_range = (t >= 0) & (t < C)
    t_safe = jnp.where(in_range, t, 0)

    # Per-sample weight w[y_i] and target logit x[i, y_i] gathered in XLA
    # (tiny N-element gathers). Out-of-range targets get weight 0 (they
    # contribute nothing to the loss numerator or denominator).
    if weights is None:
        w_i = in_range.astype(jnp.float32)                               # (N,)
    else:
        w_i = jnp.where(in_range, weights.astype(jnp.float32)[t_safe], 0.0)
    x_tgt = jnp.take_along_axis(inputs, t_safe[:, None], axis=-1)[:, 0]
    tgt_term = jnp.sum(w_i * x_tgt.astype(jnp.float32))                  # sum_i w_i * x_i[y_i]

    kernel = functools.partial(_ce_kernel, n_rows=N, n_cols=C,
                               tile_n=tile_n, tile_c=tile_c)

    partials = pl.pallas_call(
        kernel,
        out_shape=jax.ShapeDtypeStruct((num_n, 1, _LANE), jnp.float32),
        grid_spec=pltpu.PrefetchScalarGridSpec(
            num_scalar_prefetch=0,
            grid=(num_n, num_c),
            in_specs=[
                pl.BlockSpec((tile_n, tile_c), lambda i, c: (i, c)),     # logits
                pl.BlockSpec((tile_n, 1), lambda i, c: (i, 0)),          # w[y_i]
            ],
            out_specs=pl.BlockSpec((1, 1, _LANE), lambda i, c: (i, 0, 0)),
            scratch_shapes=[pltpu.VMEM((tile_n, 1), jnp.float32)] * 2,
        ),
        compiler_params=pltpu.CompilerParams(
            dimension_semantics=("parallel", "arbitrary"),   # batch ||, classes reduce
            vmem_limit_bytes=48 * 1024 * 1024,
        ),
    )(inputs, w_i.reshape(N, 1))

    # Final (weighted) mean in XLA so the batch grid axis stays parallel.
    return (jnp.sum(partials[:, 0, 0]) - tgt_term) / jnp.sum(w_i)


def _reference_ce(inputs, targets, weights=None):
    """Pure-JAX reference matching torch.nn.functional.cross_entropy."""
    N, C = inputs.shape
    if weights is None:
        weights = jnp.ones((C,), jnp.float32)
    x = inputs.astype(jnp.float32)
    lse = jax.scipy.special.logsumexp(x, axis=-1)
    tgt = jnp.take_along_axis(x, targets[:, None].astype(jnp.int32), axis=-1)[:, 0]
    w_i = weights[targets]
    return jnp.sum(w_i * (lse - tgt)) / jnp.sum(w_i)


if __name__ == "__main__":
    key = jax.random.PRNGKey(0)
    k1, k2, k3, k4, k5 = jax.random.split(key, 5)

    # Test 1: small shapes, CrossEntropyLoss() defaults (weights=None).
    N, C = 8, 32
    inputs = jax.random.normal(k1, (N, C), dtype=jnp.float32)
    targets = jax.random.randint(k2, (N,), 0, C, dtype=jnp.int32)
    loss = jax.block_until_ready(cross_entropy_loss(inputs, targets, weights=None))
    ref = _reference_ce(inputs, targets, weights=None)
    assert jnp.allclose(loss, ref, rtol=1e-5, atol=1e-5), (loss, ref)

    # Test 2: non-divisible N (row mask + 2 batch tiles), class-tiled C
    # (online logsumexp + last-tile column mask), per-class weights.
    N2, C2 = 37, 2200
    x2 = jax.random.normal(k3, (N2, C2), dtype=jnp.float32)
    t2 = jax.random.randint(k4, (N2,), 0, C2, dtype=jnp.int32)
    w2 = jax.random.uniform(k5, (C2,), dtype=jnp.float32) + 0.5
    loss2 = jax.block_until_ready(cross_entropy_loss(x2, t2, weights=w2))
    ref2 = _reference_ce(x2, t2, weights=w2)
    assert jnp.allclose(loss2, ref2, rtol=1e-4, atol=1e-5), (loss2, ref2)

    print("KERNEL_OK")
</pallas_src>

<mosaic_0001>
module attributes {stable_mosaic.version = 11 : i64} {
  func.func @_ce_kernel(%arg0: i32, %arg1: i32, %arg2: memref<8x32xf32, #tpu.memory_space<vmem>>, %arg3: memref<8x1xf32, #tpu.memory_space<vmem>>, %arg4: memref<1x1x128xf32, #tpu.memory_space<vmem>>, %arg5: memref<8x1xf32, #tpu.memory_space<vmem>>, %arg6: memref<8x1xf32, #tpu.memory_space<vmem>>) attributes {dimension_semantics = [#tpu.dimension_semantics<parallel>, #tpu.dimension_semantics<arbitrary>], iteration_bounds = array<i64: 1, 1>, scalar_prefetch = 0 : i64, scratch_operands = 2 : i64, tpu.core_type = #tpu.core_type<tc>, window_params = [{transform_indices = @transform_0, window_bounds = array<i64: 8, 32>}, {transform_indices = @transform_1, window_bounds = array<i64: 8, 1>}, {transform_indices = @transform_2, window_bounds = array<i64: 1, 1, 128>}]} {
    %c0_i32 = arith.constant 0 : i32
    %0 = arith.cmpi eq, %arg1, %c0_i32 : i32
    %1 = arith.extui %0 : i1 to i32
    %c0_i32_0 = arith.constant 0 : i32
    %2 = arith.cmpi ne, %1, %c0_i32_0 : i32
    scf.if %2 {
      %cst_15 = arith.constant 0xFF800000 : f32
      %24 = vector.broadcast %cst_15 : f32 to vector<8x1xf32>
      %c0_16 = arith.constant 0 : index
      %c0_17 = arith.constant 0 : index
      %25 = vector.load %arg5[%c0_16, %c0_17] : memref<8x1xf32, #tpu.memory_space<vmem>>, vector<8x1xf32>
      tpu.vector_store %arg5[%c0_16, %c0_17], %24 {strides = array<i32>} : memref<8x1xf32, #tpu.memory_space<vmem>>, vector<8x1xf32>,
      %cst_18 = arith.constant 0.000000e+00 : f32
      %26 = vector.broadcast %cst_18 : f32 to vector<8x1xf32>
      %c0_19 = arith.constant 0 : index
      %c0_20 = arith.constant 0 : index
      %27 = vector.load %arg6[%c0_19, %c0_20] : memref<8x1xf32, #tpu.memory_space<vmem>>, vector<8x1xf32>
      tpu.vector_store %arg6[%c0_19, %c0_20], %26 {strides = array<i32>} : memref<8x1xf32, #tpu.memory_space<vmem>>, vector<8x1xf32>,
    } else {
    }
    %c0 = arith.constant 0 : index
    %c0_1 = arith.constant 0 : index
    %3 = vector.load %arg2[%c0, %c0_1] : memref<8x32xf32, #tpu.memory_space<vmem>>, vector<8x32xf32>
    %cst = arith.constant dense<0xFF800000> : vector<8xf32>
    %4 = vector.multi_reduction <maximumf>, %3, %cst [1] : vector<8x32xf32> to vector<8xf32>
    %5 = vector.shape_cast %4 : vector<8xf32> to vector<8x1xf32>
    %c0_2 = arith.constant 0 : index
    %c0_3 = arith.constant 0 : index
    %6 = vector.load %arg5[%c0_2, %c0_3] : memref<8x1xf32, #tpu.memory_space<vmem>>, vector<8x1xf32>
    %7 = arith.maximumf %6, %5 : vector<8x1xf32>
    %c0_4 = arith.constant 0 : index
    %c0_5 = arith.constant 0 : index
    %8 = vector.load %arg5[%c0_4, %c0_5] : memref<8x1xf32, #tpu.memory_space<vmem>>, vector<8x1xf32>
    %9 = arith.subf %8, %7 : vector<8x1xf32>
    %10 = math.exp %9 : vector<8x1xf32>
    %11 = vector.broadcast %7 : vector<8x1xf32> to vector<8x32xf32>
    %12 = arith.subf %3, %11 : vector<8x32xf32>
    %13 = math.exp %12 : vector<8x32xf32>
    %cst_6 = arith.constant dense<0.000000e+00> : vector<8xf32>
    %14 = vector.multi_reduction <add>, %13, %cst_6 [1] : vector<8x32xf32> to vector<8xf32>
    %15 = vector.shape_cast %14 : vector<8xf32> to vector<8x1xf32>
    %c0_7 = arith.constant 0 : index
    %c0_8 = arith.constant 0 : index
    %16 = vector.load %arg6[%c0_7, %c0_8] : memref<8x1xf32, #tpu.memory_space<vmem>>, vector<8x1xf32>
    %17 = arith.mulf %16, %10 : vector<8x1xf32>
    %18 = arith.addf %17, %15 : vector<8x1xf32>
    %c0_9 = arith.constant 0 : index
    %c0_10 = arith.constant 0 : index
    %19 = vector.load %arg6[%c0_9, %c0_10] : memref<8x1xf32, #tpu.memory_space<vmem>>, vector<8x1xf32>
    tpu.vector_store %arg6[%c0_9, %c0_10], %18 {strides = array<i32>} : memref<8x1xf32, #tpu.memory_space<vmem>>, vector<8x1xf32>,
    %c0_11 = arith.constant 0 : index
    %c0_12 = arith.constant 0 : index
    %20 = vector.load %arg5[%c0_11, %c0_12] : memref<8x1xf32, #tpu.memory_space<vmem>>, vector<8x1xf32>
    tpu.vector_store %arg5[%c0_11, %c0_12], %7 {strides = array<i32>} : memref<8x1xf32, #tpu.memory_space<vmem>>, vector<8x1xf32>,
    %c0_i32_13 = arith.constant 0 : i32
    %21 = arith.cmpi eq, %arg1, %c0_i32_13 : i32
    %22 = arith.extui %21 : i1 to i32
    %c0_i32_14 = arith.constant 0 : i32
    %23 = arith.cmpi ne, %22, %c0_i32_14 : i32
    scf.if %23 {
      %c0_15 = arith.constant 0 : index
      %c0_16 = arith.constant 0 : index
      %24 = vector.load %arg5[%c0_15, %c0_16] : memref<8x1xf32, #tpu.memory_space<vmem>>, vector<8x1xf32>
      %c0_17 = arith.constant 0 : index
      %c0_18 = arith.constant 0 : index
      %25 = vector.load %arg6[%c0_17, %c0_18] : memref<8x1xf32, #tpu.memory_space<vmem>>, vector<8x1xf32>
      %26 = math.log %25 : vector<8x1xf32>
      %27 = arith.addf %24, %26 : vector<8x1xf32>
      %c0_19 = arith.constant 0 : index
      %c0_20 = arith.constant 0 : index
      %28 = vector.load %arg3[%c0_19, %c0_20] : memref<8x1xf32, #tpu.memory_space<vmem>>, vector<8x1xf32>
      %29 = arith.mulf %28, %27 : vector<8x1xf32>
      %cst_21 = arith.constant dense<0.000000e+00> : vector<1xf32>
      %30 = vector.multi_reduction <add>, %29, %cst_21 [0] : vector<8x1xf32> to vector<1xf32>
      %31 = vector.shape_cast %30 : vector<1xf32> to vector<1x1xf32>
      %32 = vector.shape_cast %31 : vector<1x1xf32> to vector<1x1x1xf32>
      %33 = vector.shape_cast %32 : vector<1x1x1xf32> to vector<1x1x1xf32>
      %34 = vector.broadcast %33 : vector<1x1x1xf32> to vector<1x1x128xf32>
      %c0_22 = arith.constant 0 : index
      %c0_23 = arith.constant 0 : index
      %c0_24 = arith.constant 0 : index
      %35 = vector.load %arg4[%c0_22, %c0_23, %c0_24] : memref<1x1x128xf32, #tpu.memory_space<vmem>>, vector<1x1x128xf32>
      tpu.vector_store %arg4[%c0_22, %c0_23, %c0_24], %34 {strides = array<i32>} : memref<1x1x128xf32, #tpu.memory_space<vmem>>, vector<1x1x128xf32>,
    } else {
    }
    return
  }
  func.func @transform_0(%arg0: i32, %arg1: i32) -> (i32, i32) {
    %c0_i32 = arith.constant 0 : i32
    return %arg0, %arg1 : i32, i32
  }
  func.func @transform_1(%arg0: i32, %arg1: i32) -> (i32, i32) {
    %c0_i32 = arith.constant 0 : i32
    %c0_i32_0 = arith.constant 0 : i32
    return %arg0, %c0_i32 : i32, i32
  }
  func.func @transform_2(%arg0: i32, %arg1: i32) -> (i32, i32, i32) {
    %c0_i32 = arith.constant 0 : i32
    %c0_i32_0 = arith.constant 0 : i32
    %c0_i32_1 = arith.constant 0 : i32
    return %arg0, %c0_i32, %c0_i32_0 : i32, i32, i32
  }
}

</mosaic_0001>

<llo_original>
// kernel: tpu_custom_call.1
$region0: #{tpu_custom_call.1}
  #allocation0 [shape = 'u32[]', space=smem, size = 0x4, offset = 0x4, fixed_abs, tag = 'smem constant byte address 0x4 - core index']
  #allocation1 [shape = 'u32[72,128]{1,0:T(1,128)}', space=vmem, size = 0x9000, scoped, tag = 'internal scratch']
  #allocation2 [shape = 'f32[8,1]{1,0:T(8,128)}', space=vmem, size = 0x1000, scoped, tag = 'scratch operand']
  #allocation3 [shape = 'f32[8,1]{1,0:T(8,128)}', space=vmem, size = 0x1000, scoped, tag = 'scratch operand']
  %s0 = inlined_call_operand.vmem [shape: f32[8,32], index: 0, kind: input, shape index: {}]
  %s1 = inlined_call_operand.vmem [shape: f32[8,1], index: 1, kind: input, shape index: {}]
  %s2 = inlined_call_operand.hbm [shape: f32[1,1,128], index: 2, kind: output, shape index: {}]
  %s3 = sld [smem:[#allocation0]]
  $region26: #{tpu_custom_call.1} parent=0
    _
  %s5 = ssub.s32 1, %s3
  %s6 = scalar_select 0, %s5, %s3
  $region1: #{tpu_custom_call.1} parent=0
    #allocation4 [shape = 'u8[512]{0}', space=vmem, size = 0x400, scoped, tag = 'output window, operand 0, single buffered']
    #allocation5 [shape = 's32[1]{0}', space=sflag, size = 0x4, scoped, tag = 'scoped memory for tpu_custom_call.1']
    %7 = vsyncpa [#allocation5], 0
    // Predicated region
    $region2: #{tpu_custom_call.1} parent=1 // pred_check
      _
    $region3: #{tpu_custom_call.1} parent=1 // pred_check_branch
      %9 = sbr.rel (0) target = $region5
    $region4: #{tpu_custom_call.1} parent=1 // pred_region
      _
    $region5: #{tpu_custom_call.1} parent=1 // pred_fallthru
      _
    // Predicated region
    $region6: #{tpu_custom_call.1} parent=1 // pred_check
      _
    $region7: #{tpu_custom_call.1} parent=1 // pred_check_branch
      %11 = sbr.rel (0) target = $region9
    $region8: #{tpu_custom_call.1} parent=1 // pred_region
      _
    $region9: #{tpu_custom_call.1} parent=1 // pred_fallthru
      _
    %p12 = scmp.eq.s32.totalorder 0, 0
    // Predicated region
    $region10: #{tpu_custom_call.1} parent=1 // pred_check
      %p13 = pneg %p12
    $region11: #{tpu_custom_call.1} parent=1 // pred_check_branch
      %15 = sbr.rel (%p13) target = $region13
    $region12: #{tpu_custom_call.1} parent=1 // pred_region
      %vm16 = vcmask 7168
      %17 = vst.msk [vmem:[#allocation2] sm:$0xff] %vm16, -inf
      %18 = vst.msk [vmem:[#allocation3] sm:$0xff] %vm16, 0.0
    $region13: #{tpu_custom_call.1} parent=1 // pred_fallthru
      _
    %v19 = vld [vmem:[%s0] sm:$0xff]
    %vm20 = vcmask 261120
    %v21 = vsel %vm20, %v19, -inf
    %22 = vmax.xlane.f32.xlu0 %v21
    %v23 = vpop.xlane.xlu0 %22
    %v24 = vld [vmem:[#allocation2] sm:$0xff]
    %v25 = vmax.f32 %v24, %v23
    %v26 = vsub.f32 %v24, %v25
    %v27 = vmul.f32 %v26, 1.442695
    %v28 = vpow.pop %v27
    %30 = vset.pattern.permute.xlu0 0
    %31 = vperm.xlu0 %30, %v25
    %v32 = vpop.permute.xlu0 %31
    %v34 = vsub.f32 %v19, %v32
    %v35 = vmul.f32 %v34, 1.442695
    %v36 = vpow.pop %v35
    %v37 = vsel %vm20, %v36, 0.0
    %38 = vadd.xlane.f32.xlu0 %v37
    %v39 = vpop.xlane.xlu0 %38
    %v40 = vld [vmem:[#allocation3] sm:$0xff]
    %v41 = vmul.f32 %v40, %v28
    %v42 = vadd.f32 %v41, %v39
    %vm43 = vcmask 7168
    %44 = vst.msk [vmem:[#allocation3] sm:$0xff] %vm43, %v42
    %45 = vst.msk [vmem:[#allocation2] sm:$0xff] %vm43, %v25
    // Predicated region
    $region14: #{tpu_custom_call.1} parent=1 // pred_check
      %p46 = pneg %p12
    $region15: #{tpu_custom_call.1} parent=1 // pred_check_branch
      %48 = sbr.rel (%p46) target = $region17
    $region16: #{tpu_custom_call.1} parent=1 // pred_region
      %v49 = vld [vmem:[#allocation2] sm:$0xff]
      %v50 = vld [vmem:[#allocation3] sm:$0xff]
      %v51 = vlog2.pop %v50
      %v52 = vmul.f32 %v51, 0.6931472
      %v53 = vadd.f32 %v49, %v52
      %v54 = vld [vmem:[%s1] sm:$0xff]
      %v55 = vmul.f32 %v54, %v53
      %v56 = vsel %vm43, %v55, 0.0
      %v57 = vrot.slane %v56, 4
      %v58 = vadd.f32 %v56, %v57
      %v59 = vrot.slane %v58, 2
      %v60 = vadd.f32 %v58, %v59
      %v61 = vrot.slane %v60, 1
      %v62 = vadd.f32 %v60, %v61
      %64 = vset.pattern.permute.xlu0 0
      %65 = vperm.xlu0 %64, %v62
      %v66 = vpop.permute.xlu0 %65
      %68 = vst [vmem:[#allocation4] sm:$0x1] %v66
    $region17: #{tpu_custom_call.1} parent=1 // pred_fallthru
      _
    // Predicated region
    $region18: #{tpu_custom_call.1} parent=1 // pred_check
      _
    $region19: #{tpu_custom_call.1} parent=1 // pred_check_branch
      %70 = sbr.rel (0) target = $region21
    $region20: #{tpu_custom_call.1} parent=1 // pred_region
      %72 = vsyncadd [#allocation5], 0
      %s74 = sshll.u32 [#allocation4], 4
      %s75 = int_to_ptr.vmem [resolvable:$true] %s74
      %s76 = sshll.u32 %s2, 4
      %s77 = int_to_ptr.hbm [resolvable:$true] %s76
      %79 = dma.vmem_to_hbm [thread:$0]  %s75, 16, %s77, [#allocation5]
    $region21: #{tpu_custom_call.1} parent=1 // pred_fallthru
      _
    // Predicated region
    $region22: #{tpu_custom_call.1} parent=1 // pred_check
      _
    $region23: #{tpu_custom_call.1} parent=1 // pred_check_branch
      %81 = sbr.rel (0) target = $region25
    $region24: #{tpu_custom_call.1} parent=1 // pred_region
      %83 = dma.done [#allocation5], 16
    $region25: #{tpu_custom_call.1} parent=1 // pred_fallthru
      _
    %84 = vsyncpa [#allocation5], 1

</llo_original>
